<compile_context>
chip_gen: v7x
topology: tpu7x:2x2x1
jax: 0.10.0
libtpu: 0.0.40
codegen_flags: <defaults>
</compile_context>

<pallas_src>
import functools

import jax
import jax.numpy as jnp
from jax.experimental import pallas as pl
from jax.experimental.pallas import tpu as pltpu


def _round_up(a, b):
    return ((a + b - 1) // b) * b


def _layernorm_kernel(x_ref, g_ref, b_ref, o_ref, *, eps):
    # x_ref: (1, C, Tt) block; g_ref/b_ref: (C, 1)
    x = x_ref[0].astype(jnp.float32)                    # (C, Tt)
    mean = jnp.mean(x, axis=0, keepdims=True)           # (1, Tt) cross-sublane (XLU)
    xc = x - mean
    var = jnp.mean(xc * xc, axis=0, keepdims=True)      # biased var (matches F.layer_norm)
    inv = jax.lax.rsqrt(var + eps)                      # (1, Tt)
    g = g_ref[...].astype(jnp.float32)                  # (C, 1)
    b = b_ref[...].astype(jnp.float32)                  # (C, 1)
    y = xc * (inv * g) + b                              # broadcast -> (C, Tt)
    o_ref[0] = y.astype(o_ref.dtype)


def _pick_t_tile(C, T, itemsize,
                 target_block_bytes=2 << 20,
                 vmem_budget_bytes=24 << 20):
    """Lane-dense (multiple of 128) T tile sized for throughput + VMEM safety."""
    lane = 128
    t_full = _round_up(T, lane)
    # tile so that one input block is ~target_block_bytes ...
    want = max(lane, (target_block_bytes // max(1, C * itemsize)) // lane * lane)
    # ... capped so in+out double-buffered (4 blocks) fits the scoped VMEM budget.
    cap = max(lane, (vmem_budget_bytes // max(1, 4 * C * itemsize)) // lane * lane)
    return min(want, cap, t_full)


def layer_norm_pallas(x, gamma, beta, eps=1e-5, t_tile=None):
    """x: (B, C, T); gamma/beta: (C,). Returns (B, C, T)."""
    B, C, T = x.shape
    itemsize = jnp.dtype(x.dtype).itemsize
    if t_tile is None:
        t_tile = _pick_t_tile(C, T, itemsize)
    t_tile = max(128, _round_up(t_tile, 128))

    # Ragged tail: pad T up to a multiple of the tile, slice back afterwards.
    T_pad = _round_up(T, t_tile)
    x_p = x if T_pad == T else jnp.pad(x, ((0, 0), (0, 0), (0, T_pad - T)))

    g2 = gamma.reshape(C, 1)
    b2 = beta.reshape(C, 1)

    grid = (B, T_pad // t_tile)

    out = pl.pallas_call(
        functools.partial(_layernorm_kernel, eps=eps),
        out_shape=jax.ShapeDtypeStruct((B, C, T_pad), x.dtype),
        grid_spec=pltpu.PrefetchScalarGridSpec(
            num_scalar_prefetch=0,
            grid=grid,
            in_specs=[
                pl.BlockSpec((1, C, t_tile), lambda b, t: (b, 0, t)),
                pl.BlockSpec((C, 1), lambda b, t: (0, 0)),
                pl.BlockSpec((C, 1), lambda b, t: (0, 0)),
            ],
            out_specs=pl.BlockSpec((1, C, t_tile), lambda b, t: (b, 0, t)),
        ),
        compiler_params=pltpu.CompilerParams(
            dimension_semantics=("parallel", "parallel"),
        ),
    )(x_p, g2, b2)

    if T_pad != T:
        out = out[:, :, :T]
    return out


def layer_norm_ref(x, gamma, beta, eps=1e-5):
    # Pure-JAX reference mirroring the PyTorch forward.
    x_t = jnp.swapaxes(x, 1, -1)
    mean = jnp.mean(x_t, axis=-1, keepdims=True)
    var = jnp.mean((x_t - mean) ** 2, axis=-1, keepdims=True)
    y = (x_t - mean) / jnp.sqrt(var + eps) * gamma + beta
    return jnp.swapaxes(y, 1, -1)


if __name__ == "__main__":
    key = jax.random.PRNGKey(0)
    B, C, T = 2, 32, 16
    x = jax.random.normal(key, (B, C, T), dtype=jnp.float32)

    # Deterministic parameter init (nn.Parameter(torch.ones/zeros(channels)))
    gamma = jnp.ones((C,), dtype=jnp.float32)
    beta = jnp.zeros((C,), dtype=jnp.float32)

    out = layer_norm_pallas(x, gamma, beta, eps=1e-5)
    out = jax.block_until_ready(out)

    ref = layer_norm_ref(x, gamma, beta, eps=1e-5)
    assert out.shape == (B, C, T)
    assert jnp.allclose(out, ref, atol=1e-5, rtol=1e-5)

    # Also exercise a ragged / larger shape to check tail padding + bigger tiles.
    B2, C2, T2 = 2, 64, 300
    x2 = jax.random.normal(jax.random.PRNGKey(1), (B2, C2, T2), dtype=jnp.float32)
    g2 = jax.random.normal(jax.random.PRNGKey(2), (C2,), dtype=jnp.float32)
    b2 = jax.random.normal(jax.random.PRNGKey(3), (C2,), dtype=jnp.float32)
    out2 = jax.block_until_ready(layer_norm_pallas(x2, g2, b2))
    ref2 = layer_norm_ref(x2, g2, b2)
    assert jnp.allclose(out2, ref2, atol=1e-4, rtol=1e-4)

    print("KERNEL_OK")
</pallas_src>

<mosaic_0001>
module attributes {stable_mosaic.version = 11 : i64} {
  func.func @_layernorm_kernel(%arg0: i32, %arg1: i32, %arg2: memref<1x32x128xf32, #tpu.memory_space<vmem>>, %arg3: memref<32x1xf32, #tpu.memory_space<vmem>>, %arg4: memref<32x1xf32, #tpu.memory_space<vmem>>, %arg5: memref<1x32x128xf32, #tpu.memory_space<vmem>>) attributes {dimension_semantics = [#tpu.dimension_semantics<parallel>, #tpu.dimension_semantics<parallel>], iteration_bounds = array<i64: 2, 1>, scalar_prefetch = 0 : i64, scratch_operands = 0 : i64, tpu.core_type = #tpu.core_type<tc>, window_params = [{transform_indices = @transform_0, window_bounds = array<i64: 1, 32, 128>}, {pipeline_mode = #tpu.pipeline_mode<synchronous>, transform_indices = @transform_1, window_bounds = array<i64: 32, 1>}, {pipeline_mode = #tpu.pipeline_mode<synchronous>, transform_indices = @transform_2, window_bounds = array<i64: 32, 1>}, {transform_indices = @transform_3, window_bounds = array<i64: 1, 32, 128>}]} {
    %c0 = arith.constant 0 : index
    %c0_0 = arith.constant 0 : index
    %c0_1 = arith.constant 0 : index
    %0 = vector.load %arg2[%c0, %c0_0, %c0_1] : memref<1x32x128xf32, #tpu.memory_space<vmem>>, vector<1x32x128xf32>
    %1 = vector.shape_cast %0 : vector<1x32x128xf32> to vector<32x128xf32>
    %cst = arith.constant dense<0.000000e+00> : vector<128xf32>
    %2 = vector.multi_reduction <add>, %1, %cst [0] : vector<32x128xf32> to vector<128xf32>
    %3 = vector.shape_cast %2 : vector<128xf32> to vector<1x128xf32>
    %cst_2 = arith.constant 3.200000e+01 : f32
    %4 = vector.broadcast %cst_2 : f32 to vector<1x128xf32>
    %5 = arith.divf %3, %4 : vector<1x128xf32>
    %6 = vector.broadcast %5 : vector<1x128xf32> to vector<32x128xf32>
    %7 = arith.subf %1, %6 : vector<32x128xf32>
    %8 = arith.mulf %7, %7 : vector<32x128xf32>
    %cst_3 = arith.constant dense<0.000000e+00> : vector<128xf32>
    %9 = vector.multi_reduction <add>, %8, %cst_3 [0] : vector<32x128xf32> to vector<128xf32>
    %10 = vector.shape_cast %9 : vector<128xf32> to vector<1x128xf32>
    %cst_4 = arith.constant 3.200000e+01 : f32
    %11 = vector.broadcast %cst_4 : f32 to vector<1x128xf32>
    %12 = arith.divf %10, %11 : vector<1x128xf32>
    %cst_5 = arith.constant 9.99999974E-6 : f32
    %13 = vector.broadcast %cst_5 : f32 to vector<1x128xf32>
    %14 = arith.addf %12, %13 : vector<1x128xf32>
    %15 = math.rsqrt %14 : vector<1x128xf32>
    %c0_6 = arith.constant 0 : index
    %c0_7 = arith.constant 0 : index
    %16 = vector.load %arg3[%c0_6, %c0_7] : memref<32x1xf32, #tpu.memory_space<vmem>>, vector<32x1xf32>
    %c0_8 = arith.constant 0 : index
    %c0_9 = arith.constant 0 : index
    %17 = vector.load %arg4[%c0_8, %c0_9] : memref<32x1xf32, #tpu.memory_space<vmem>>, vector<32x1xf32>
    %18 = vector.broadcast %15 : vector<1x128xf32> to vector<32x128xf32>
    %19 = vector.broadcast %16 : vector<32x1xf32> to vector<32x128xf32>
    %20 = arith.mulf %18, %19 : vector<32x128xf32>
    %21 = arith.mulf %7, %20 : vector<32x128xf32>
    %22 = vector.broadcast %17 : vector<32x1xf32> to vector<32x128xf32>
    %23 = arith.addf %21, %22 : vector<32x128xf32>
    %c0_10 = arith.constant 0 : index
    %c0_11 = arith.constant 0 : index
    %c0_12 = arith.constant 0 : index
    %24 = vector.load %arg5[%c0_10, %c0_11, %c0_12] : memref<1x32x128xf32, #tpu.memory_space<vmem>>, vector<1x32x128xf32>
    %25 = vector.shape_cast %24 : vector<1x32x128xf32> to vector<32x128xf32>
    %26 = vector.shape_cast %23 : vector<32x128xf32> to vector<1x32x128xf32>
    tpu.vector_store %arg5[%c0_10, %c0_11, %c0_12], %26 {strides = array<i32>} : memref<1x32x128xf32, #tpu.memory_space<vmem>>, vector<1x32x128xf32>,
    return
  }
  func.func @transform_0(%arg0: i32, %arg1: i32) -> (i32, i32, i32) {
    %c0_i32 = arith.constant 0 : i32
    %c0_i32_0 = arith.constant 0 : i32
    return %arg0, %c0_i32, %arg1 : i32, i32, i32
  }
  func.func @transform_1(%arg0: i32, %arg1: i32) -> (i32, i32) {
    %c0_i32 = arith.constant 0 : i32
    %c0_i32_0 = arith.constant 0 : i32
    %c0_i32_1 = arith.constant 0 : i32
    return %c0_i32, %c0_i32_0 : i32, i32
  }
  func.func @transform_2(%arg0: i32, %arg1: i32) -> (i32, i32) {
    %c0_i32 = arith.constant 0 : i32
    %c0_i32_0 = arith.constant 0 : i32
    %c0_i32_1 = arith.constant 0 : i32
    return %c0_i32, %c0_i32_0 : i32, i32
  }
  func.func @transform_3(%arg0: i32, %arg1: i32) -> (i32, i32, i32) {
    %c0_i32 = arith.constant 0 : i32
    %c0_i32_0 = arith.constant 0 : i32
    return %arg0, %c0_i32, %arg1 : i32, i32, i32
  }
}

</mosaic_0001>

<llo_original>
// kernel: tpu_custom_call.1
$region0: #{tpu_custom_call.1}
  #allocation0 [shape = 'u32[]', space=smem, size = 0x4, offset = 0x4, fixed_abs, tag = 'smem constant byte address 0x4 - core index']
  #allocation1 [shape = 'u32[144,128]{1,0:T(1,128)}', space=vmem, size = 0x12000, scoped, tag = 'internal scratch']
  %s0 = inlined_call_operand.vmem [shape: f32[2,32,128], index: 0, kind: input, shape index: {}]
  %s1 = inlined_call_operand.vmem [shape: f32[32,1], index: 1, kind: input, shape index: {}]
  %s2 = inlined_call_operand.vmem [shape: f32[32,1], index: 2, kind: input, shape index: {}]
  %s3 = inlined_call_operand.hbm [shape: f32[2,32,128], index: 3, kind: output, shape index: {}]
  %s4 = sld [smem:[#allocation0]]
  $region45: #{tpu_custom_call.1} parent=0
    _
  %s6 = ssub.s32 1, %s4
  %s7 = scalar_select 0, %s6, %s4
  $region1: #{tpu_custom_call.1} parent=0
    #allocation2 [shape = 'u8[32768]{0}', space=vmem, size = 0x8000, scoped, tag = 'output window, operand 0']
    #allocation3 [shape = 's32[2]{0}', space=sflag, size = 0x8, scoped, tag = 'scoped memory for tpu_custom_call.1']
    %8 = vsyncpa [#allocation3], 0
    %s9 = scalar_lea.sflag [#allocation3], 1
    %10 = vsyncpa %s9, 0
    loop: start=0, step=1, limit=4
    $region2: #{tpu_custom_call.1} parent=1 // loop_pre_header
      _
    $region3: #{tpu_custom_call.1} parent=1 // loop_header
      %s12 = sphi 0, %s16
      %p13 = scmp.ge.s32.totalorder %s12, 4
      %s19 = sphi 0, %s31
      %s20 = sphi 0, %s27
      %s21 = sphi 0, %s19
      %s22 = sphi 0, %s20
      %s23 = sphi 0, %s21
      %s24 = sphi 0, %s22
      %s36 = sphi 0, %s38
      %s39 = sphi 0, %s36
      %s40 = sphi 0, %s39
      %s56 = sphi 0, %s40
      %s60 = sphi 0, %s60
      %s62 = sphi 0, %s60
      %s63 = sphi 0, %s62
      %s77 = sphi 0, %s63
      %s81 = sphi 0, %s81
      %s83 = sphi 0, %s81
      %s84 = sphi 0, %s83
      %s98 = sphi 0, %s84
      %s106 = sphi 0, %s108
      %s109 = sphi 0, %s106
      %s110 = sphi 0, %s109
      %s126 = sphi 0, %s110
    $region4: #{tpu_custom_call.1} parent=1 // loop_header_branch
      %15 = sbr.rel (%p13) target = $region8
    $region5: #{tpu_custom_call.1} parent=1 // loop_body
      %s17 = ssub.s32 %s12, 1
      %s18 = ssub.s32 %s12, 2
      %s25 = sadd.s32 1, %s20
      %p26 = scmp.ge.s32.totalorder %s25, 1
      %s27 = scalar_select %p26, 0, %s25
      %s28 = sadd.s32 1, %s19
      %s29 = scalar_select %p26, %s28, %s19
      %p30 = scmp.ge.s32.totalorder %s29, 2
      %s31 = scalar_select %p30, 0, %s29
      %s32 = ssub.s32 %s19, %s31
      %s33 = ssub.s32 %s20, %s27
      %s34 = sor.u32 %s32, %s33
      %p35 = scmp.eq.s32.totalorder %s34, 0
      %s37 = sadd.s32 %s36, 1
      %s38 = scalar_select %p35, %s36, %s37
      %p41 = pneg %p35
      %p42 = scmp.eq.s32.totalorder %s12, 1
      %p43 = por %p41, %p42
      %p44 = scmp.ne.s32.totalorder %s36, %s39
      %p45 = scmp.eq.s32.totalorder %s12, 0
      %p46 = por %p44, %p45
      %p47 = scmp.ne.s32.totalorder %s36, %s39
      %p48 = scmp.eq.s32.totalorder %s17, 1
      %p49 = por %p47, %p48
      %p50 = scmp.ne.s32.totalorder %s39, %s40
      %p51 = scmp.eq.s32.totalorder %s17, 0
      %p52 = por %p50, %p51
      %p53 = scmp.ne.s32.totalorder %s39, %s40
      %p54 = scmp.eq.s32.totalorder %s18, 1
      %p55 = por %p53, %p54
      %p57 = scmp.ne.s32.totalorder %s40, %s56
      %p58 = scmp.eq.s32.totalorder %s18, 0
      %p59 = por %p57, %p58
      %s61 = sadd.s32 %s60, 1
      %p64 = scmp.eq.s32.totalorder %s12, 1
      %p65 = scmp.ne.s32.totalorder %s60, %s62
      %p66 = scmp.eq.s32.totalorder %s12, 0
      %p67 = por %p65, %p66
      %p68 = scmp.ne.s32.totalorder %s60, %s62
      %p69 = scmp.eq.s32.totalorder %s17, 1
      %p70 = por %p68, %p69
      %p71 = scmp.ne.s32.totalorder %s62, %s63
      %p72 = scmp.eq.s32.totalorder %s17, 0
      %p73 = por %p71, %p72
      %p74 = scmp.ne.s32.totalorder %s62, %s63
      %p75 = scmp.eq.s32.totalorder %s18, 1
      %p76 = por %p74, %p75
      %p78 = scmp.ne.s32.totalorder %s63, %s77
      %p79 = scmp.eq.s32.totalorder %s18, 0
      %p80 = por %p78, %p79
      %s82 = sadd.s32 %s81, 1
      %p85 = scmp.eq.s32.totalorder %s12, 1
      %p86 = scmp.ne.s32.totalorder %s81, %s83
      %p87 = scmp.eq.s32.totalorder %s12, 0
      %p88 = por %p86, %p87
      %p89 = scmp.ne.s32.totalorder %s81, %s83
      %p90 = scmp.eq.s32.totalorder %s17, 1
      %p91 = por %p89, %p90
      %p92 = scmp.ne.s32.totalorder %s83, %s84
      %p93 = scmp.eq.s32.totalorder %s17, 0
      %p94 = por %p92, %p93
      %p95 = scmp.ne.s32.totalorder %s83, %s84
      %p96 = scmp.eq.s32.totalorder %s18, 1
      %p97 = por %p95, %p96
      %p99 = scmp.ne.s32.totalorder %s84, %s98
      %p100 = scmp.eq.s32.totalorder %s18, 0
      %p101 = por %p99, %p100
      %s102 = ssub.s32 %s19, %s31
      %s103 = ssub.s32 %s20, %s27
      %s104 = sor.u32 %s102, %s103
      %p105 = scmp.eq.s32.totalorder %s104, 0
      %s107 = sadd.s32 %s106, 1
      %s108 = scalar_select %p105, %s106, %s107
      %p111 = pneg %p105
      %p112 = scmp.eq.s32.totalorder %s12, 1
      %p113 = por %p111, %p112
      %p114 = scmp.ne.s32.totalorder %s106, %s109
      %p115 = scmp.eq.s32.totalorder %s12, 0
      %p116 = por %p114, %p115
      %p117 = scmp.ne.s32.totalorder %s106, %s109
      %p118 = scmp.eq.s32.totalorder %s17, 1
      %p119 = por %p117, %p118
      %p120 = scmp.ne.s32.totalorder %s109, %s110
      %p121 = scmp.eq.s32.totalorder %s17, 0
      %p122 = por %p120, %p121
      %p123 = scmp.ne.s32.totalorder %s109, %s110
      %p124 = scmp.eq.s32.totalorder %s18, 1
      %p125 = por %p123, %p124
      %p127 = scmp.ne.s32.totalorder %s110, %s126
      %p128 = scmp.eq.s32.totalorder %s18, 0
      %p129 = por %p127, %p128
      %p130 = scmp.le.s32.totalorder 1, %s12
      %p131 = scmp.lt.s32.totalorder %s12, 3
      %p132 = pnand %p130, %p131
      %p133 = pneg %p132
      // Predicated region
      $region9: #{tpu_custom_call.1} parent=5 // pred_check
        _
      $region10: #{tpu_custom_call.1} parent=5 // pred_check_branch
        %135 = sbr.rel (%p132) target = $region12
      $region11: #{tpu_custom_call.1} parent=5 // pred_region
        %s136 = ssub.s32 %s12, 1
        // Predicated region
        $region13: #{tpu_custom_call.1} parent=11 // pred_check
          %p137 = pneg %p73
        $region14: #{tpu_custom_call.1} parent=11 // pred_check_branch
          %139 = sbr.rel (%p137) target = $region16
        $region15: #{tpu_custom_call.1} parent=11 // pred_region
          _
        $region16: #{tpu_custom_call.1} parent=11 // pred_fallthru
          _
        // Predicated region
        $region17: #{tpu_custom_call.1} parent=11 // pred_check
          %p140 = pneg %p94
        $region18: #{tpu_custom_call.1} parent=11 // pred_check_branch
          %142 = sbr.rel (%p140) target = $region20
        $region19: #{tpu_custom_call.1} parent=11 // pred_region
          _
        $region20: #{tpu_custom_call.1} parent=11 // pred_fallthru
          _
      $region12: #{tpu_custom_call.1} parent=5 // pred_fallthru
        _
      %p143 = scmp.lt.s32.totalorder %s12, 2
      // Predicated region
      $region21: #{tpu_custom_call.1} parent=5 // pred_check
        %p144 = pneg %p143
      $region22: #{tpu_custom_call.1} parent=5 // pred_check_branch
        %146 = sbr.rel (%p144) target = $region24
      $region23: #{tpu_custom_call.1} parent=5 // pred_region
        // Predicated region
        $region25: #{tpu_custom_call.1} parent=23 // pred_check
          %p147 = pneg %p46
        $region26: #{tpu_custom_call.1} parent=23 // pred_check_branch
          %149 = sbr.rel (%p147) target = $region28
        $region27: #{tpu_custom_call.1} parent=23 // pred_region
          %p150 = scmp.lt.s32.totalorder %s19, 1
          %s151 = scalar_select %p150, %s19, 1
          %p152 = scmp.lt.s32.totalorder %s20, 0
          %s153 = scalar_select %p152, %s20, 0
          %s154 = smul.addr %s151, 4
          %s155 = sadd.s32 %s153, %s154
          %s156 = smul.addr %s155, 8
          %s157 = scalar_lea.vmem %s0, %s156
        $region28: #{tpu_custom_call.1} parent=23 // pred_fallthru
          _
      $region24: #{tpu_custom_call.1} parent=5 // pred_fallthru
        _
      %p158 = scmp.le.s32.totalorder 1, %s12
      %p159 = scmp.lt.s32.totalorder %s12, 3
      %p160 = pnand %p158, %p159
      %p161 = pneg %p160
      // Predicated region
      $region29: #{tpu_custom_call.1} parent=5 // pred_check
        _
      $region30: #{tpu_custom_call.1} parent=5 // pred_check_branch
        %163 = sbr.rel (%p160) target = $region32
      $region31: #{tpu_custom_call.1} parent=5 // pred_region
        %s164 = ssub.s32 %s12, 1
        %p165 = scmp.lt.s32.totalorder %s21, 1
        %s166 = scalar_select %p165, %s21, 1
        %p167 = scmp.lt.s32.totalorder %s22, 0
        %s168 = scalar_select %p167, %s22, 0
        %s169 = smul.addr %s166, 4
        %s170 = sadd.s32 %s168, %s169
        %s171 = smul.addr %s170, 8
        %s172 = scalar_lea.vmem %s0, %s171
        %p173 = pneg %p52
        %p174 = pneg %p49
        %p175 = pneg %p73
        %p176 = pneg %p70
        %p177 = pneg %p94
        %p178 = pneg %p91
        %p179 = pneg %p122
        %p180 = pneg %p119
        %s181 = sand.u32 %s109, 1
        %s182 = scalar_lea.sflag [#allocation3], %s181
        %s183 = sand.u32 %s109, 1
        %s184 = smul.addr %s183, 32
        %s185 = scalar_lea.vmem [#allocation2], %s184
        %p186 = scmp.lt.s32.totalorder %s21, 1
        %s187 = scalar_select %p186, %s21, 1
        %p188 = scmp.lt.s32.totalorder %s22, 0
        %s189 = scalar_select %p188, %s22, 0
        %s190 = smul.addr %s187, 4
        %s191 = sadd.s32 %s189, %s190
        %s192 = smul.addr %s191, 8
        %s193 = scalar_lea.vmem %s0, %s192
        %v194 = vld [vmem:[%s193] sm:$0xff]
        %v195 = vld [vmem:[%s193 + $0x8] sm:$0xff]
        %v196 = vld [vmem:[%s193 + $0x10] sm:$0xff]
        %v197 = vld [vmem:[%s193 + $0x18] sm:$0xff]
        %v198 = vadd.f32 %v194, %v195
        %v199 = vadd.f32 %v198, %v196
        %v200 = vadd.f32 %v199, %v197
        %v201 = vrot.slane %v200, 4
        %v202 = vadd.f32 %v200, %v201
        %v203 = vrot.slane %v202, 2
        %v204 = vadd.f32 %v202, %v203
        %v205 = vrot.slane %v204, 1
        %v206 = vadd.f32 %v204, %v205
        %v207 = vrcp.pop 32.0
        %v208 = vmul.f32 %v206, %v207
        %v209 = vsub.f32 %v194, %v208
        %v210 = vsub.f32 %v195, %v208
        %v211 = vsub.f32 %v196, %v208
        %v212 = vsub.f32 %v197, %v208
        %v213 = vmul.f32 %v209, %v209
        %v214 = vmul.f32 %v210, %v210
        %v215 = vmul.f32 %v211, %v211
        %v216 = vmul.f32 %v212, %v212
        %v217 = vadd.f32 %v213, %v214
        %v218 = vadd.f32 %v217, %v215
        %v219 = vadd.f32 %v218, %v216
        %v220 = vrot.slane %v219, 4
        %v221 = vadd.f32 %v219, %v220
        %v222 = vrot.slane %v221, 2
        %v223 = vadd.f32 %v221, %v222
        %v224 = vrot.slane %v223, 1
        %v225 = vadd.f32 %v223, %v224
        %v226 = vmul.f32 %v225, %v207
        %v227 = vadd.f32 %v226, 1e-05
        %v228 = vrsqrt.pop %v227
        %v229 = vld [vmem:[%s1] sm:$0xff]
        %v230 = vld [vmem:[%s1 + $0x8] sm:$0xff]
        %v231 = vld [vmem:[%s1 + $0x10] sm:$0xff]
        %v232 = vld [vmem:[%s1 + $0x18] sm:$0xff]
        %v233 = vld [vmem:[%s2] sm:$0xff]
        %v234 = vld [vmem:[%s2 + $0x8] sm:$0xff]
        %v235 = vld [vmem:[%s2 + $0x10] sm:$0xff]
        %v236 = vld [vmem:[%s2 + $0x18] sm:$0xff]
        %238 = vset.pattern.permute.xlu0 0
        %239 = vperm.xlu0 %238, %v229
        %v240 = vpop.permute.xlu0 %239
        %243 = vset.pattern.permute.xlu0 0
        %244 = vperm.xlu0 %243, %v230
        %v245 = vpop.permute.xlu0 %244
        %248 = vset.pattern.permute.xlu0 0
        %249 = vperm.xlu0 %248, %v231
        %v250 = vpop.permute.xlu0 %249
        %253 = vset.pattern.permute.xlu0 0
        %254 = vperm.xlu0 %253, %v232
        %v255 = vpop.permute.xlu0 %254
        %v257 = vmul.f32 %v228, %v240
        %v258 = vmul.f32 %v228, %v245
        %v259 = vmul.f32 %v228, %v250
        %v260 = vmul.f32 %v228, %v255
        %v261 = vmul.f32 %v209, %v257
        %v262 = vmul.f32 %v210, %v258
        %v263 = vmul.f32 %v211, %v259
        %v264 = vmul.f32 %v212, %v260
        %266 = vset.pattern.permute.xlu0 0
        %267 = vperm.xlu0 %266, %v233
        %v268 = vpop.permute.xlu0 %267
        %271 = vset.pattern.permute.xlu0 0
        %272 = vperm.xlu0 %271, %v234
        %v273 = vpop.permute.xlu0 %272
        %276 = vset.pattern.permute.xlu0 0
        %277 = vperm.xlu0 %276, %v235
        %v278 = vpop.permute.xlu0 %277
        %281 = vset.pattern.permute.xlu0 0
        %282 = vperm.xlu0 %281, %v236
        %v283 = vpop.permute.xlu0 %282
        %v285 = vadd.f32 %v261, %v268
        %v286 = vadd.f32 %v262, %v273
        %v287 = vadd.f32 %v263, %v278
        %v288 = vadd.f32 %v264, %v283
        %289 = vst [vmem:[%s185] sm:$0xff] %v285
        %290 = vst [vmem:[%s185 + $0x8] sm:$0xff] %v286
        %291 = vst [vmem:[%s185 + $0x10] sm:$0xff] %v287
        %292 = vst [vmem:[%s185 + $0x18] sm:$0xff] %v288
        %s293 = sand.u32 %s109, 1
        %s294 = scalar_lea.sflag [#allocation3], %s293
        %s295 = sand.u32 %s109, 1
        %s296 = smul.addr %s295, 32
        %s297 = scalar_lea.vmem [#allocation2], %s296
        // Predicated region
        $region33: #{tpu_custom_call.1} parent=31 // pred_check
          %p298 = pneg %p119
        $region34: #{tpu_custom_call.1} parent=31 // pred_check_branch
          %300 = sbr.rel (%p298) target = $region36
        $region35: #{tpu_custom_call.1} parent=31 // pred_region
          %s302 = ssub.s32 512, 512
          %303 = vsyncadd %s294, %s302
          %s304 = smul.addr %s21, 4
          %s305 = sadd.s32 %s22, %s304
          %s306 = smul.addr %s305, 128
          %s307 = scalar_lea.hbm %s3, %s306
          %s308 = sshll.u32 %s297, 4
          %s309 = int_to_ptr.vmem [resolvable:$true] %s308
          %314 = dma.vmem_to_hbm [thread:$0]  %s309, 512, %s307, %s294, 128, 128, 8
        $region36: #{tpu_custom_call.1} parent=31 // pred_fallthru
          _
      $region32: #{tpu_custom_call.1} parent=5 // pred_fallthru
        _
      %p315 = scmp.le.s32.totalorder 2, %s12
      // Predicated region
      $region37: #{tpu_custom_call.1} parent=5 // pred_check
        %p316 = pneg %p315
      $region38: #{tpu_custom_call.1} parent=5 // pred_check_branch
        %318 = sbr.rel (%p316) target = $region40
      $region39: #{tpu_custom_call.1} parent=5 // pred_region
        %s319 = ssub.s32 %s12, 2
        // Predicated region
        $region41: #{tpu_custom_call.1} parent=39 // pred_check
          %p320 = pneg %p125
        $region42: #{tpu_custom_call.1} parent=39 // pred_check_branch
          %322 = sbr.rel (%p320) target = $region44
        $region43: #{tpu_custom_call.1} parent=39 // pred_region
          %s323 = sand.u32 %s110, 1
          %s324 = scalar_lea.sflag [#allocation3], %s323
          %s325 = sand.u32 %s110, 1
          %s326 = smul.addr %s325, 32
          %s327 = scalar_lea.vmem [#allocation2], %s326
          %328 = dma.done %s324, 512
        $region44: #{tpu_custom_call.1} parent=39 // pred_fallthru
          _
      $region40: #{tpu_custom_call.1} parent=5 // pred_fallthru
        _
    $region6: #{tpu_custom_call.1} parent=1 // loop_footer
      %s16 = sadd.s32 1, %s12
    $region7: #{tpu_custom_call.1} parent=1 // loop_footer_branch
      %11 = sbr.rel target = $region3
    $region8: #{tpu_custom_call.1} parent=1 // loop_exit
      _
    %329 = vsyncpa [#allocation3], 1
    %s330 = scalar_lea.sflag [#allocation3], 1
    %331 = vsyncpa %s330, 1

</llo_original>
